<compile_context>
chip_gen: v7x
topology: tpu7x:2x2x1
jax: 0.10.0
libtpu: 0.0.40
codegen_flags: <defaults>
</compile_context>

<pallas_src>
import functools

import numpy as np

import jax
import jax.numpy as jnp
from jax.experimental import pallas as pl
from jax.experimental.pallas import tpu as pltpu

MASK_TOKEN = 1024
N_CODEBOOKS = 14

# Conservative double-buffered VMEM footprint target: fits the default scoped
# VMEM limit on v5e (16 MiB), v6e (32 MiB) and v7x (32 MiB) with headroom.
_VMEM_BUDGET_BYTES = 12 * 1024 * 1024
_MAX_LANE_TILE = 32768


def _keep_pattern_ct(n_codebooks, seq_len, periodic_prompt, upper_codebook_mask,
                     start):
    """Batch-invariant (C, T) keep pattern (True where codes survive, mask==0).

    Pure jnp, evaluated by XLA in the wrapper with *runtime* scalars, so
    changing periodic_prompt / upper_codebook_mask / offset never recompiles.
    Mirrors the torch indexing exactly, including negative-offset wraparound of
    `mask[:, :, indices] = 0`.
    """
    p = jnp.asarray(periodic_prompt, jnp.int32)
    u = jnp.asarray(upper_codebook_mask, jnp.int32)
    s = jnp.asarray(start, jnp.int32)
    p_safe = jnp.maximum(p, 1)

    t = jnp.arange(seq_len, dtype=jnp.int32)
    # indices = arange(start, T, p): non-negative indices hit positions with
    # t >= start and (t - start) % p == 0 ...
    per_pos = (t >= s) & ((t - s) % p_safe == 0)
    # ... negative indices i in [start, 0) wrap around to position i + T.
    tw = t - seq_len
    per_neg = (tw >= s) & ((tw - s) % p_safe == 0)
    periodic = (p > 0) & (per_pos | per_neg)                       # (T,)

    c = jnp.arange(n_codebooks, dtype=jnp.int32)
    upper_eff = jnp.where(u > 0, u, n_codebooks)                   # 0 => keep all
    return periodic[None, :] & (c[:, None] < upper_eff)            # (C, T) bool


def _masked_select_kernel(keep_ref, codes_ref, masked_ref, *, mask_token):
    """masked = where(keep, codes, mask_token) -- the only HBM-heavy stream.

    keep_ref  : (C, tile) int32   -- batch-invariant keep pattern (mask == 0)
    codes_ref : (B, C, tile) int  -- input tokens
    masked_ref: (B, C, tile) int  -- output masked codes
    """
    keep = keep_ref[...] != 0                       # (C, tile), held in vregs once
    codes = codes_ref[...]                          # (B, C, tile)
    fill = jnp.asarray(mask_token, dtype=codes.dtype)
    masked_ref[...] = jnp.where(keep[None, :, :], codes, fill)


def _apply_mask_pallas(codes, keep_i32, mask_token):
    B, C, T = codes.shape
    itemsize = jnp.dtype(codes.dtype).itemsize
    # Double-buffered bytes per lane column: keep + codes + masked_codes.
    per_col = 2 * (C * keep_i32.dtype.itemsize + 2 * B * C * itemsize)
    if T * per_col <= _VMEM_BUDGET_BYTES or T <= 128:
        col_tile, n_tiles = T, 1                    # single grid step
    else:
        col_tile = (_VMEM_BUDGET_BYTES // per_col) // 128 * 128
        col_tile = max(128, min(_MAX_LANE_TILE, col_tile))
        n_tiles = pl.cdiv(T, col_tile)              # ragged last block: OOB writes dropped

    semantics = ("parallel",) if n_tiles > 1 else ("arbitrary",)
    kernel = functools.partial(_masked_select_kernel, mask_token=mask_token)
    return pl.pallas_call(
        kernel,
        grid=(n_tiles,),
        in_specs=[
            pl.BlockSpec((C, col_tile), lambda j: (0, j)),          # keep pattern
            pl.BlockSpec((B, C, col_tile), lambda j: (0, 0, j)),    # codes
        ],
        out_specs=pl.BlockSpec((B, C, col_tile), lambda j: (0, 0, j)),
        out_shape=jax.ShapeDtypeStruct((B, C, T), codes.dtype),
        compiler_params=pltpu.CompilerParams(dimension_semantics=semantics),
    )(keep_i32, codes)


@functools.partial(jax.jit, static_argnames=("mask_token",))
def _forward_impl(codes, periodic_prompt, upper_codebook_mask, start, *, mask_token):
    B, C, T = codes.shape
    keep_i32 = _keep_pattern_ct(C, T, periodic_prompt, upper_codebook_mask,
                                start).astype(jnp.int32)
    masked = _apply_mask_pallas(codes, keep_i32, mask_token)
    # mask is batch-invariant; let XLA materialize (and potentially fuse) the
    # broadcast instead of paying a second kernel output stream.
    mask = jnp.broadcast_to((1 - keep_i32)[None, :, :], (B, C, T))
    return mask, masked


def mask_generator_forward(codes, periodic_prompt, upper_codebook_mask,
                           offset=None, mask_token=MASK_TOKEN):
    """JAX/Pallas equivalent of MaskGenerator.forward.

    codes: int array [B, C, T]
    Returns (mask int32 [B, C, T], masked_codes [B, C, T] with codes' dtype).
    NOTE: torch.long is represented as int32 on TPU.
    """
    start = 0 if offset is None else offset
    p = jnp.asarray(periodic_prompt, jnp.int32)
    u = jnp.asarray(upper_codebook_mask, jnp.int32)
    s = jnp.asarray(start, jnp.int32)
    return _forward_impl(codes, p, u, s, mask_token=int(mask_token))


class MaskGenerator:
    """Thin stateless mirror of the PyTorch module."""

    def __init__(self, n_codebooks=N_CODEBOOKS, mask_token=MASK_TOKEN):
        self.n_codebooks = n_codebooks
        self.mask_token = mask_token

    def __call__(self, codes, periodic_prompt, upper_codebook_mask, offset=None):
        return mask_generator_forward(codes, periodic_prompt, upper_codebook_mask,
                                      offset, mask_token=self.mask_token)

    def create_periodic_mask(self, batch_size, seq_len, periodic_prompt, offset=0):
        keep = _keep_pattern_ct(self.n_codebooks, seq_len, periodic_prompt, 0, offset)
        mask = 1 - keep.astype(jnp.int32)
        return jnp.broadcast_to(mask[None], (batch_size, self.n_codebooks, seq_len))


def _reference(codes_np, periodic_prompt, upper_codebook_mask, offset, mask_token):
    """Pure numpy reference following the PyTorch forward step by step."""
    B, C, T = codes_np.shape
    mask = np.ones((B, C, T), dtype=np.int32)
    if periodic_prompt > 0:
        start = 0 if offset is None else offset
        idx = np.arange(start, T, periodic_prompt)
        idx = idx[idx < T]
        if idx.shape[0] > 0:
            mask[:, :, idx] = 0          # numpy wraps negatives like torch
    if upper_codebook_mask > 0:
        mask[:, upper_codebook_mask:, :] = 1
    masked = np.where(mask.astype(bool),
                      np.full_like(codes_np, mask_token), codes_np)
    return mask, masked


if __name__ == "__main__":
    key = jax.random.PRNGKey(0)
    B, C, T = 2, N_CODEBOOKS, 32
    codes = jax.random.randint(key, (B, C, T), 0, MASK_TOKEN, dtype=jnp.int32)
    codes_np = np.asarray(codes)

    cases = [
        (3, 4, 1),       # periodic + upper codebook mask + positive offset
        (4, 0, None),    # upper_codebook_mask == 0 (zeros survive everywhere)
        (0, 6, None),    # periodic_prompt == 0 (no periodic zeroing at all)
        (7, 14, -2),     # negative offset -> wraparound indexing
    ]
    for i, (p, u, off) in enumerate(cases):
        mask, masked = mask_generator_forward(codes, p, u, off)
        jax.block_until_ready((mask, masked))
        ref_mask, ref_masked = _reference(codes_np, p, u, off, MASK_TOKEN)
        assert np.array_equal(np.asarray(mask), ref_mask), f"mask mismatch (case {i})"
        assert np.array_equal(np.asarray(masked), ref_masked), f"masked mismatch (case {i})"

    print("KERNEL_OK")
</pallas_src>

<mosaic_0001>
module attributes {stable_mosaic.version = 11 : i64} {
  func.func @_masked_select_kernel(%arg0: i32, %arg1: memref<14x32xi32, #tpu.memory_space<vmem>>, %arg2: memref<2x14x32xi32, #tpu.memory_space<vmem>>, %arg3: memref<2x14x32xi32, #tpu.memory_space<vmem>>) attributes {dimension_semantics = [#tpu.dimension_semantics<arbitrary>], iteration_bounds = array<i64: 1>, scalar_prefetch = 0 : i64, scratch_operands = 0 : i64, tpu.core_type = #tpu.core_type<tc>, window_params = [{transform_indices = @transform_0, window_bounds = array<i64: 14, 32>}, {transform_indices = @transform_1, window_bounds = array<i64: 2, 14, 32>}, {transform_indices = @transform_2, window_bounds = array<i64: 2, 14, 32>}]} {
    %c0 = arith.constant 0 : index
    %c0_0 = arith.constant 0 : index
    %0 = vector.load %arg1[%c0, %c0_0] : memref<14x32xi32, #tpu.memory_space<vmem>>, vector<14x32xi32>
    %c0_i32 = arith.constant 0 : i32
    %1 = vector.broadcast %c0_i32 : i32 to vector<14x32xi32>
    %2 = arith.cmpi ne, %0, %1 : vector<14x32xi32>
    %c0_1 = arith.constant 0 : index
    %c0_2 = arith.constant 0 : index
    %c0_3 = arith.constant 0 : index
    %3 = vector.load %arg2[%c0_1, %c0_2, %c0_3] : memref<2x14x32xi32, #tpu.memory_space<vmem>>, vector<2x14x32xi32>
    %4 = vector.shape_cast %2 : vector<14x32xi1> to vector<1x14x32xi1>
    %c1024_i32 = arith.constant 1024 : i32
    %5 = vector.shape_cast %4 : vector<1x14x32xi1> to vector<1x14x32xi1>
    %6 = vector.broadcast %5 : vector<1x14x32xi1> to vector<2x14x32xi1>
    %7 = vector.broadcast %c1024_i32 : i32 to vector<2x14x32xi32>
    %8 = arith.select %6, %3, %7 : vector<2x14x32xi1>, vector<2x14x32xi32>
    %c0_4 = arith.constant 0 : index
    %c0_5 = arith.constant 0 : index
    %c0_6 = arith.constant 0 : index
    %9 = vector.load %arg3[%c0_4, %c0_5, %c0_6] : memref<2x14x32xi32, #tpu.memory_space<vmem>>, vector<2x14x32xi32>
    tpu.vector_store %arg3[%c0_4, %c0_5, %c0_6], %8 {strides = array<i32>} : memref<2x14x32xi32, #tpu.memory_space<vmem>>, vector<2x14x32xi32>,
    return
  }
  func.func @transform_0(%arg0: i32) -> (i32, i32) {
    %c0_i32 = arith.constant 0 : i32
    %c0_i32_0 = arith.constant 0 : i32
    return %c0_i32, %arg0 : i32, i32
  }
  func.func @transform_1(%arg0: i32) -> (i32, i32, i32) {
    %c0_i32 = arith.constant 0 : i32
    %c0_i32_0 = arith.constant 0 : i32
    %c0_i32_1 = arith.constant 0 : i32
    return %c0_i32, %c0_i32_0, %arg0 : i32, i32, i32
  }
  func.func @transform_2(%arg0: i32) -> (i32, i32, i32) {
    %c0_i32 = arith.constant 0 : i32
    %c0_i32_0 = arith.constant 0 : i32
    %c0_i32_1 = arith.constant 0 : i32
    return %c0_i32, %c0_i32_0, %arg0 : i32, i32, i32
  }
}

</mosaic_0001>

<llo_original>
// kernel: _forward_impl.1
$region0: #{_forward_impl.1}
  #allocation0 [shape = 'u32[]', space=smem, size = 0x4, offset = 0x4, fixed_abs, tag = 'smem constant byte address 0x4 - core index']
  #allocation1 [shape = 'u32[144,128]{1,0:T(1,128)}', space=vmem, size = 0x12000, scoped, tag = 'internal scratch']
  %s0 = inlined_call_operand.vmem [shape: s32[14,32], index: 0, kind: input, shape index: {}]
  %s1 = inlined_call_operand.vmem [shape: s32[2,14,32], index: 1, kind: input, shape index: {}]
  %s2 = inlined_call_operand.vmem [shape: s32[2,14,32], index: 2, kind: output, shape index: {}]
  %s3 = sld [smem:[#allocation0]]
  $region18: #{_forward_impl.1} parent=0
    _
  %s5 = ssub.s32 1, %s3
  %s6 = scalar_select 0, %s5, %s3
  // Predicated region
  $region2: #{_forward_impl.1} parent=0 // pred_check
    _
  $region3: #{_forward_impl.1} parent=0 // pred_check_branch
    %8 = sbr.rel (0) target = $region5
  $region4: #{_forward_impl.1} parent=0 // pred_region
    _
  $region5: #{_forward_impl.1} parent=0 // pred_fallthru
    _
  // Predicated region
  $region6: #{_forward_impl.1} parent=0 // pred_check
    _
  $region7: #{_forward_impl.1} parent=0 // pred_check_branch
    %10 = sbr.rel (0) target = $region9
  $region8: #{_forward_impl.1} parent=0 // pred_region
    _
  $region9: #{_forward_impl.1} parent=0 // pred_fallthru
    _
  %v11 = vld [vmem:[%s0] sm:$0xff]
  %v12 = vld [vmem:[%s0 + $0x8] sm:$0x3f]
  %vm13 = vcmp.ne.s32.totalorder %v11, 0
  %vm14 = vcmp.ne.s32.totalorder %v12, 0
  %v15 = vld [vmem:[%s1] sm:$0xff]
  %v16 = vld [vmem:[%s1 + $0x8] sm:$0x3f]
  %v17 = vld [vmem:[%s1 + $0x10] sm:$0xff]
  %v18 = vld [vmem:[%s1 + $0x18] sm:$0x3f]
  %v19 = vsel %vm13, 1, 0
  %v20 = vsel %vm14, 1, 0
  %vm21 = vcmp.eq.s32.totalorder %v19, 1
  %vm22 = vcmp.eq.s32.totalorder %v20, 1
  %v23 = vsel %vm21, %v15, 1024
  %v24 = vsel %vm22, %v16, 1024
  %v25 = vsel %vm21, %v17, 1024
  %v26 = vsel %vm22, %v18, 1024
  %vm27 = vcmask 261120
  %28 = vst.msk [vmem:[%s2] sm:$0xff] %vm27, %v23
  %vm29 = vcmask 259072
  %30 = vst.msk [vmem:[%s2 + $0x8] sm:$0x3f] %vm29, %v24
  %31 = vst.msk [vmem:[%s2 + $0x10] sm:$0xff] %vm27, %v25
  %32 = vst.msk [vmem:[%s2 + $0x18] sm:$0x3f] %vm29, %v26
  // Predicated region
  $region10: #{_forward_impl.1} parent=0 // pred_check
    _
  $region11: #{_forward_impl.1} parent=0 // pred_check_branch
    %34 = sbr.rel (0) target = $region13
  $region12: #{_forward_impl.1} parent=0 // pred_region
    _
  $region13: #{_forward_impl.1} parent=0 // pred_fallthru
    _
  // Predicated region
  $region14: #{_forward_impl.1} parent=0 // pred_check
    _
  $region15: #{_forward_impl.1} parent=0 // pred_check_branch
    %36 = sbr.rel (0) target = $region17
  $region16: #{_forward_impl.1} parent=0 // pred_region
    _
  $region17: #{_forward_impl.1} parent=0 // pred_fallthru
    _

</llo_original>
